<compile_context>
chip_gen: v7x
topology: tpu7x:2x2x1
jax: 0.10.0
libtpu: 0.0.40
codegen_flags: <defaults>
</compile_context>

<pallas_src>
import jax
import jax.numpy as jnp
from jax.experimental import pallas as pl
from jax.experimental.pallas import tpu as pltpu

LANE = 128
TM_MIN = 16        # bf16 sublane packing wants row tiles in multiples of 16
TM_MAX = 2048      # ~2.5 MiB double-buffered tiles -> tiny even for v7x's 64 MiB VMEM
TARGET_STEPS = 8   # keep >=2 grid steps (v7x megacore) and amortize ~0.35 us/step


def _round_up(v, m):
    return (v + m - 1) // m * m


def _choose_tm(m):
    """Row-tile size: multiple of 16, capped at TM_MAX, aiming for ~TARGET_STEPS
    grid steps so v7x's second TensorCore never idles when M > one tile."""
    m16 = _round_up(max(m, 1), TM_MIN)
    tm = _round_up(pl.cdiv(m16, TARGET_STEPS), TM_MIN)
    return max(TM_MIN, min(TM_MAX, tm))


def _mlp_kernel(x_ref, w1_ref, b1_ref, w2_ref, b2_ref, o_ref):
    # Fused: relu(relu(x @ W1 + b1) @ W2 + b2) on one VMEM-resident (TM, *) tile.
    # x arrives in the producer dtype and is cast to bf16 on the VPU (hidden
    # under the DMA); MXU runs bf16 x bf16 -> f32 accumulation; bias adds in f32.
    x = x_ref[...].astype(jnp.bfloat16)
    h = jnp.dot(x, w1_ref[...], preferred_element_type=jnp.float32) + b1_ref[...]
    h = jnp.maximum(h, 0.0).astype(w2_ref.dtype)
    o = jnp.dot(h, w2_ref[...], preferred_element_type=jnp.float32) + b2_ref[...]
    o_ref[...] = jnp.maximum(o, 0.0).astype(o_ref.dtype)


def prepare_params(w1, b1, w2, b2):
    """One-time weight prep: zero-pad hidden/class dims to 128 lanes and cast
    matmul operands to bf16.  w1/w2 use the transposed (in, out) layout.
    Padding is exact: padded b1/b2 lanes are 0, ReLU(0)=0, padded w2 rows are 0,
    so padded hidden lanes never leak into real class lanes."""
    K, H = w1.shape
    C = w2.shape[1]
    Hp = _round_up(max(H, LANE), LANE)
    Cp = _round_up(max(C, LANE), LANE)

    w1p = jnp.zeros((K, Hp), jnp.float32).at[:, :H].set(w1).astype(jnp.bfloat16)
    b1p = jnp.zeros((1, Hp), jnp.float32).at[0, :H].set(b1)
    w2p = jnp.zeros((Hp, Cp), jnp.float32).at[:H, :C].set(w2).astype(jnp.bfloat16)
    b2p = jnp.zeros((1, Cp), jnp.float32).at[0, :C].set(b2)
    return w1p, b1p, w2p, b2p


def simple_model_forward_padded(x, w1p, b1p, w2p, b2p, input_dim):
    """Performance path.  x: any shape whose total size is divisible by
    input_dim (PyTorch reshape(-1, input_dim) semantics); any float dtype.
    Returns the lane-padded (M, 128) bf16 output; real classes live in
    [:, :num_classes].  Slice lazily / inside the consumer's jit region."""
    x2d = x.reshape(-1, input_dim)          # no wrapper dtype cast, no jnp.pad
    M, K = x2d.shape
    Hp = w1p.shape[1]
    Cp = w2p.shape[1]

    TM = _choose_tm(M)
    grid = (pl.cdiv(M, TM),)                # ragged last tile masked by Pallas

    x_bytes = jnp.dtype(x2d.dtype).itemsize
    # VMEM budget: double-buffered x/out tiles + resident padded weights/biases.
    vmem_need = (
        2 * TM * K * x_bytes        # x tiles (double buffered, producer dtype)
        + 2 * TM * Cp * 2           # bf16 out tiles (double buffered)
        + K * Hp * 2 + Hp * 4       # resident w1 (bf16) + b1 (f32)
        + Hp * Cp * 2 + Cp * 4      # resident w2 (bf16) + b2 (f32)
    )
    # Cap at 64 MiB: v7x has only 64 MiB VMEM per TensorCore.
    vmem_limit = int(min(64 * 1024 * 1024, max(32 * 1024 * 1024, 2 * vmem_need)))

    cost = pl.CostEstimate(
        flops=2 * M * (K * Hp + Hp * Cp),
        transcendentals=0,
        bytes_accessed=(M * K * x_bytes + K * Hp * 2 + Hp * Cp * 2
                        + Hp * 4 + Cp * 4 + M * Cp * 2),
    )

    return pl.pallas_call(
        _mlp_kernel,
        out_shape=jax.ShapeDtypeStruct((M, Cp), jnp.bfloat16),
        grid=grid,
        in_specs=[
            pl.BlockSpec((TM, K), lambda i: (i, 0)),   # x tile marches over M
            pl.BlockSpec((K, Hp), lambda i: (0, 0)),   # weights stay resident
            pl.BlockSpec((1, Hp), lambda i: (0, 0)),
            pl.BlockSpec((Hp, Cp), lambda i: (0, 0)),
            pl.BlockSpec((1, Cp), lambda i: (0, 0)),
        ],
        out_specs=pl.BlockSpec((TM, Cp), lambda i: (i, 0)),  # lane-dense (TM, 128)
        compiler_params=pltpu.CompilerParams(
            dimension_semantics=("parallel",),   # shard M tiles across v7x's 2 TCs
            vmem_limit_bytes=vmem_limit,
        ),
        cost_estimate=cost,
    )(x2d, w1p, b1p, w2p, b2p)


def simple_model_forward(x, w1p, b1p, w2p, b2p, input_dim, num_classes):
    """Convenience wrapper matching the PyTorch output shape (M, num_classes).
    Prefer calling simple_model_forward_padded and slicing inside the consumer's
    jit so the narrow slice is not an extra eager HBM pass."""
    return simple_model_forward_padded(x, w1p, b1p, w2p, b2p, input_dim)[:, :num_classes]


if __name__ == "__main__":
    # Module hyperparameters (small, consistent with the forward pass).
    input_dim = 64
    hidden_dim = 32
    num_classes = 7

    key = jax.random.PRNGKey(0)
    kx, kx2, kw1, kb1, kw2, kb2 = jax.random.split(key, 6)

    # Example input: NCHW tensor whose flattened size is divisible by input_dim.
    x = jax.random.normal(kx, (2, 4, 16, 16), dtype=jnp.float32)   # 2048 elems -> (32, 64)
    # A second, ragged-batch input (M=30, not a multiple of the 16-row tile)
    # exercising the masked last-tile path with no wrapper padding.
    x_ragged = jax.random.normal(kx2, (30, input_dim), dtype=jnp.float32)

    # Deterministic parameter init (PyTorch Linear stores weight as (out, in);
    # we keep the transposed (in, out) layout for direct matmul).
    w1 = jax.random.normal(kw1, (input_dim, hidden_dim), dtype=jnp.float32) * 0.05
    b1 = jax.random.normal(kb1, (hidden_dim,), dtype=jnp.float32) * 0.05
    w2 = jax.random.normal(kw2, (hidden_dim, num_classes), dtype=jnp.float32) * 0.05
    b2 = jax.random.normal(kb2, (num_classes,), dtype=jnp.float32) * 0.05

    # One-time weight prep (pad + cast).
    w1p, b1p, w2p, b2p = prepare_params(w1, b1, w2, b2)

    # Jit the forward so reshape/slice fuse around the custom call.
    fwd = jax.jit(
        lambda xx, a, c, d, e: simple_model_forward_padded(xx, a, c, d, e, input_dim)
    )

    def ref_fn(xx):
        x2d = xx.reshape(-1, input_dim)
        return jnp.maximum(jnp.maximum(x2d @ w1 + b1, 0.0) @ w2 + b2, 0.0)

    for name, xin in (("aligned", x), ("ragged", x_ragged)):
        out_padded = jax.block_until_ready(fwd(xin, w1p, b1p, w2p, b2p))
        m = xin.size // input_dim
        assert out_padded.shape == (m, 128) and out_padded.dtype == jnp.bfloat16
        out = out_padded[:, :num_classes].astype(jnp.float32)
        ref = ref_fn(xin)
        # bf16 MXU inputs / bf16 output (f32 accumulation) -> relaxed tolerance.
        assert jnp.allclose(out, ref, atol=2e-2, rtol=2e-2), f"mismatch on {name}"

    print("KERNEL_OK")
</pallas_src>

<mosaic_0001>
module attributes {stable_mosaic.version = 11 : i64} {
  func.func @_mlp_kernel(%arg0: i32, %arg1: memref<16x64xf32, #tpu.memory_space<vmem>>, %arg2: memref<64x128xbf16, #tpu.memory_space<vmem>>, %arg3: memref<1x128xf32, #tpu.memory_space<vmem>>, %arg4: memref<128x128xbf16, #tpu.memory_space<vmem>>, %arg5: memref<1x128xf32, #tpu.memory_space<vmem>>, %arg6: memref<16x128xbf16, #tpu.memory_space<vmem>>) attributes {dimension_semantics = [#tpu.dimension_semantics<parallel>], iteration_bounds = array<i64: 2>, scalar_prefetch = 0 : i64, scratch_operands = 0 : i64, tpu.core_type = #tpu.core_type<tc>, window_params = [{transform_indices = @transform_0, window_bounds = array<i64: 16, 64>}, {pipeline_mode = #tpu.pipeline_mode<synchronous>, transform_indices = @transform_1, window_bounds = array<i64: 64, 128>}, {pipeline_mode = #tpu.pipeline_mode<synchronous>, transform_indices = @transform_2, window_bounds = array<i64: 1, 128>}, {pipeline_mode = #tpu.pipeline_mode<synchronous>, transform_indices = @transform_3, window_bounds = array<i64: 128, 128>}, {pipeline_mode = #tpu.pipeline_mode<synchronous>, transform_indices = @transform_4, window_bounds = array<i64: 1, 128>}, {transform_indices = @transform_5, window_bounds = array<i64: 16, 128>}]} {
    %c0 = arith.constant 0 : index
    %c0_0 = arith.constant 0 : index
    %0 = vector.load %arg1[%c0, %c0_0] : memref<16x64xf32, #tpu.memory_space<vmem>>, vector<16x64xf32>
    %1 = arith.truncf %0 : vector<16x64xf32> to vector<16x64xbf16>
    %c0_1 = arith.constant 0 : index
    %c0_2 = arith.constant 0 : index
    %2 = vector.load %arg2[%c0_1, %c0_2] : memref<64x128xbf16, #tpu.memory_space<vmem>>, vector<64x128xbf16>
    %cst = arith.constant dense<0.000000e+00> : vector<16x128xf32>
    %3 = tpu.matmul %1, %2, %cst {dimension_numbers = #tpu.dot_dimension_numbers<[1], [0], [0], [1], [0, 0, 1, 1], [], []>} : vector<16x64xbf16>, vector<64x128xbf16>, vector<16x128xf32> -> vector<16x128xf32>
    %c0_3 = arith.constant 0 : index
    %c0_4 = arith.constant 0 : index
    %4 = vector.load %arg3[%c0_3, %c0_4] : memref<1x128xf32, #tpu.memory_space<vmem>>, vector<1x128xf32>
    %5 = vector.broadcast %4 : vector<1x128xf32> to vector<16x128xf32>
    %6 = arith.addf %3, %5 : vector<16x128xf32>
    %cst_5 = arith.constant 0.000000e+00 : f32
    %7 = vector.broadcast %cst_5 : f32 to vector<16x128xf32>
    %8 = arith.maximumf %6, %7 : vector<16x128xf32>
    %9 = arith.truncf %8 : vector<16x128xf32> to vector<16x128xbf16>
    %c0_6 = arith.constant 0 : index
    %c0_7 = arith.constant 0 : index
    %10 = vector.load %arg4[%c0_6, %c0_7] : memref<128x128xbf16, #tpu.memory_space<vmem>>, vector<128x128xbf16>
    %cst_8 = arith.constant dense<0.000000e+00> : vector<16x128xf32>
    %11 = tpu.matmul %9, %10, %cst_8 {dimension_numbers = #tpu.dot_dimension_numbers<[1], [0], [0], [1], [0, 0, 1, 1], [], []>} : vector<16x128xbf16>, vector<128x128xbf16>, vector<16x128xf32> -> vector<16x128xf32>
    %c0_9 = arith.constant 0 : index
    %c0_10 = arith.constant 0 : index
    %12 = vector.load %arg5[%c0_9, %c0_10] : memref<1x128xf32, #tpu.memory_space<vmem>>, vector<1x128xf32>
    %13 = vector.broadcast %12 : vector<1x128xf32> to vector<16x128xf32>
    %14 = arith.addf %11, %13 : vector<16x128xf32>
    %cst_11 = arith.constant 0.000000e+00 : f32
    %15 = vector.broadcast %cst_11 : f32 to vector<16x128xf32>
    %16 = arith.maximumf %14, %15 : vector<16x128xf32>
    %17 = arith.truncf %16 : vector<16x128xf32> to vector<16x128xbf16>
    %c0_12 = arith.constant 0 : index
    %c0_13 = arith.constant 0 : index
    %18 = vector.load %arg6[%c0_12, %c0_13] : memref<16x128xbf16, #tpu.memory_space<vmem>>, vector<16x128xbf16>
    tpu.vector_store %arg6[%c0_12, %c0_13], %17 {strides = array<i32>} : memref<16x128xbf16, #tpu.memory_space<vmem>>, vector<16x128xbf16>,
    return
  }
  func.func @transform_0(%arg0: i32) -> (i32, i32) {
    %c0_i32 = arith.constant 0 : i32
    %c0_i32_0 = arith.constant 0 : i32
    return %arg0, %c0_i32 : i32, i32
  }
  func.func @transform_1(%arg0: i32) -> (i32, i32) {
    %c0_i32 = arith.constant 0 : i32
    %c0_i32_0 = arith.constant 0 : i32
    %c0_i32_1 = arith.constant 0 : i32
    return %c0_i32, %c0_i32_0 : i32, i32
  }
  func.func @transform_2(%arg0: i32) -> (i32, i32) {
    %c0_i32 = arith.constant 0 : i32
    %c0_i32_0 = arith.constant 0 : i32
    %c0_i32_1 = arith.constant 0 : i32
    return %c0_i32, %c0_i32_0 : i32, i32
  }
  func.func @transform_3(%arg0: i32) -> (i32, i32) {
    %c0_i32 = arith.constant 0 : i32
    %c0_i32_0 = arith.constant 0 : i32
    %c0_i32_1 = arith.constant 0 : i32
    return %c0_i32, %c0_i32_0 : i32, i32
  }
  func.func @transform_4(%arg0: i32) -> (i32, i32) {
    %c0_i32 = arith.constant 0 : i32
    %c0_i32_0 = arith.constant 0 : i32
    %c0_i32_1 = arith.constant 0 : i32
    return %c0_i32, %c0_i32_0 : i32, i32
  }
  func.func @transform_5(%arg0: i32) -> (i32, i32) {
    %c0_i32 = arith.constant 0 : i32
    %c0_i32_0 = arith.constant 0 : i32
    return %arg0, %c0_i32 : i32, i32
  }
}

</mosaic_0001>

<llo_original>
// kernel: _lambda_.1
$region0: #{_lambda_.1}
  #allocation0 [shape = 'u32[]', space=smem, size = 0x4, offset = 0x4, fixed_abs, tag = 'smem constant byte address 0x4 - core index']
  #allocation1 [shape = 'u32[144,128]{1,0:T(1,128)}', space=vmem, size = 0x12000, scoped, tag = 'internal scratch']
  %s0 = inlined_call_operand.vmem [shape: f32[32,64], index: 0, kind: input, shape index: {}]
  %s1 = inlined_call_operand.vmem [shape: bf16[64,128], index: 1, kind: input, shape index: {}]
  %s2 = inlined_call_operand.vmem [shape: f32[1,128], index: 2, kind: input, shape index: {}]
  %s3 = inlined_call_operand.vmem [shape: bf16[128,128], index: 3, kind: input, shape index: {}]
  %s4 = inlined_call_operand.vmem [shape: f32[1,128], index: 4, kind: input, shape index: {}]
  %s5 = inlined_call_operand.hbm [shape: bf16[32,128], index: 5, kind: output, shape index: {}]
  %s6 = sld [smem:[#allocation0]]
  $region53: #{_lambda_.1} parent=0
    _
  %s8 = ssub.s32 1, %s6
  %s9 = scalar_select 0, %s8, %s6
  $region1: #{_lambda_.1} parent=0
    #allocation2 [shape = 'u8[8192]{0}', space=vmem, size = 0x2000, scoped, tag = 'output window, operand 0']
    #allocation3 [shape = 's32[2]{0}', space=sflag, size = 0x8, scoped, tag = 'scoped memory for _lambda_.1']
    %10 = vsyncpa [#allocation3], 0
    %s11 = scalar_lea.sflag [#allocation3], 1
    %12 = vsyncpa %s11, 0
    loop: start=0, step=1, limit=4
    $region2: #{_lambda_.1} parent=1 // loop_pre_header
      _
    $region3: #{_lambda_.1} parent=1 // loop_header
      %s14 = sphi 0, %s18
      %p15 = scmp.ge.s32.totalorder %s14, 4
      %s24 = sphi 0, %s26
      %s27 = sphi 0, %s24
      %s28 = sphi 0, %s27
      %s44 = sphi 0, %s28
      %s48 = sphi 0, %s48
      %s50 = sphi 0, %s48
      %s51 = sphi 0, %s50
      %s65 = sphi 0, %s51
      %s69 = sphi 0, %s69
      %s71 = sphi 0, %s69
      %s72 = sphi 0, %s71
      %s86 = sphi 0, %s72
      %s90 = sphi 0, %s90
      %s92 = sphi 0, %s90
      %s93 = sphi 0, %s92
      %s107 = sphi 0, %s93
      %s111 = sphi 0, %s111
      %s113 = sphi 0, %s111
      %s114 = sphi 0, %s113
      %s128 = sphi 0, %s114
      %s134 = sphi 0, %s136
      %s137 = sphi 0, %s134
      %s138 = sphi 0, %s137
      %s154 = sphi 0, %s138
    $region4: #{_lambda_.1} parent=1 // loop_header_branch
      %17 = sbr.rel (%p15) target = $region8
    $region5: #{_lambda_.1} parent=1 // loop_body
      %s19 = ssub.s32 %s14, 1
      %s20 = ssub.s32 %s14, 2
      %s21 = sadd.s32 %s14, 1
      %s22 = ssub.s32 %s14, %s21
      %p23 = scmp.eq.s32.totalorder %s22, 0
      %s25 = sadd.s32 %s24, 1
      %s26 = scalar_select %p23, %s24, %s25
      %p29 = pneg %p23
      %p30 = scmp.eq.s32.totalorder %s14, 1
      %p31 = por %p29, %p30
      %p32 = scmp.ne.s32.totalorder %s24, %s27
      %p33 = scmp.eq.s32.totalorder %s14, 0
      %p34 = por %p32, %p33
      %p35 = scmp.ne.s32.totalorder %s24, %s27
      %p36 = scmp.eq.s32.totalorder %s19, 1
      %p37 = por %p35, %p36
      %p38 = scmp.ne.s32.totalorder %s27, %s28
      %p39 = scmp.eq.s32.totalorder %s19, 0
      %p40 = por %p38, %p39
      %p41 = scmp.ne.s32.totalorder %s27, %s28
      %p42 = scmp.eq.s32.totalorder %s20, 1
      %p43 = por %p41, %p42
      %p45 = scmp.ne.s32.totalorder %s28, %s44
      %p46 = scmp.eq.s32.totalorder %s20, 0
      %p47 = por %p45, %p46
      %s49 = sadd.s32 %s48, 1
      %p52 = scmp.eq.s32.totalorder %s14, 1
      %p53 = scmp.ne.s32.totalorder %s48, %s50
      %p54 = scmp.eq.s32.totalorder %s14, 0
      %p55 = por %p53, %p54
      %p56 = scmp.ne.s32.totalorder %s48, %s50
      %p57 = scmp.eq.s32.totalorder %s19, 1
      %p58 = por %p56, %p57
      %p59 = scmp.ne.s32.totalorder %s50, %s51
      %p60 = scmp.eq.s32.totalorder %s19, 0
      %p61 = por %p59, %p60
      %p62 = scmp.ne.s32.totalorder %s50, %s51
      %p63 = scmp.eq.s32.totalorder %s20, 1
      %p64 = por %p62, %p63
      %p66 = scmp.ne.s32.totalorder %s51, %s65
      %p67 = scmp.eq.s32.totalorder %s20, 0
      %p68 = por %p66, %p67
      %s70 = sadd.s32 %s69, 1
      %p73 = scmp.eq.s32.totalorder %s14, 1
      %p74 = scmp.ne.s32.totalorder %s69, %s71
      %p75 = scmp.eq.s32.totalorder %s14, 0
      %p76 = por %p74, %p75
      %p77 = scmp.ne.s32.totalorder %s69, %s71
      %p78 = scmp.eq.s32.totalorder %s19, 1
      %p79 = por %p77, %p78
      %p80 = scmp.ne.s32.totalorder %s71, %s72
      %p81 = scmp.eq.s32.totalorder %s19, 0
      %p82 = por %p80, %p81
      %p83 = scmp.ne.s32.totalorder %s71, %s72
      %p84 = scmp.eq.s32.totalorder %s20, 1
      %p85 = por %p83, %p84
      %p87 = scmp.ne.s32.totalorder %s72, %s86
      %p88 = scmp.eq.s32.totalorder %s20, 0
      %p89 = por %p87, %p88
      %s91 = sadd.s32 %s90, 1
      %p94 = scmp.eq.s32.totalorder %s14, 1
      %p95 = scmp.ne.s32.totalorder %s90, %s92
      %p96 = scmp.eq.s32.totalorder %s14, 0
      %p97 = por %p95, %p96
      %p98 = scmp.ne.s32.totalorder %s90, %s92
      %p99 = scmp.eq.s32.totalorder %s19, 1
      %p100 = por %p98, %p99
      %p101 = scmp.ne.s32.totalorder %s92, %s93
      %p102 = scmp.eq.s32.totalorder %s19, 0
      %p103 = por %p101, %p102
      %p104 = scmp.ne.s32.totalorder %s92, %s93
      %p105 = scmp.eq.s32.totalorder %s20, 1
      %p106 = por %p104, %p105
      %p108 = scmp.ne.s32.totalorder %s93, %s107
      %p109 = scmp.eq.s32.totalorder %s20, 0
      %p110 = por %p108, %p109
      %s112 = sadd.s32 %s111, 1
      %p115 = scmp.eq.s32.totalorder %s14, 1
      %p116 = scmp.ne.s32.totalorder %s111, %s113
      %p117 = scmp.eq.s32.totalorder %s14, 0
      %p118 = por %p116, %p117
      %p119 = scmp.ne.s32.totalorder %s111, %s113
      %p120 = scmp.eq.s32.totalorder %s19, 1
      %p121 = por %p119, %p120
      %p122 = scmp.ne.s32.totalorder %s113, %s114
      %p123 = scmp.eq.s32.totalorder %s19, 0
      %p124 = por %p122, %p123
      %p125 = scmp.ne.s32.totalorder %s113, %s114
      %p126 = scmp.eq.s32.totalorder %s20, 1
      %p127 = por %p125, %p126
      %p129 = scmp.ne.s32.totalorder %s114, %s128
      %p130 = scmp.eq.s32.totalorder %s20, 0
      %p131 = por %p129, %p130
      %s132 = ssub.s32 %s14, %s21
      %p133 = scmp.eq.s32.totalorder %s132, 0
      %s135 = sadd.s32 %s134, 1
      %s136 = scalar_select %p133, %s134, %s135
      %p139 = pneg %p133
      %p140 = scmp.eq.s32.totalorder %s14, 1
      %p141 = por %p139, %p140
      %p142 = scmp.ne.s32.totalorder %s134, %s137
      %p143 = scmp.eq.s32.totalorder %s14, 0
      %p144 = por %p142, %p143
      %p145 = scmp.ne.s32.totalorder %s134, %s137
      %p146 = scmp.eq.s32.totalorder %s19, 1
      %p147 = por %p145, %p146
      %p148 = scmp.ne.s32.totalorder %s137, %s138
      %p149 = scmp.eq.s32.totalorder %s19, 0
      %p150 = por %p148, %p149
      %p151 = scmp.ne.s32.totalorder %s137, %s138
      %p152 = scmp.eq.s32.totalorder %s20, 1
      %p153 = por %p151, %p152
      %p155 = scmp.ne.s32.totalorder %s138, %s154
      %p156 = scmp.eq.s32.totalorder %s20, 0
      %p157 = por %p155, %p156
      %p158 = scmp.le.s32.totalorder 1, %s14
      %p159 = scmp.lt.s32.totalorder %s14, 3
      %p160 = pnand %p158, %p159
      %p161 = pneg %p160
      // Predicated region
      $region9: #{_lambda_.1} parent=5 // pred_check
        _
      $region10: #{_lambda_.1} parent=5 // pred_check_branch
        %163 = sbr.rel (%p160) target = $region12
      $region11: #{_lambda_.1} parent=5 // pred_region
        %s164 = ssub.s32 %s14, 1
        // Predicated region
        $region13: #{_lambda_.1} parent=11 // pred_check
          %p165 = pneg %p61
        $region14: #{_lambda_.1} parent=11 // pred_check_branch
          %167 = sbr.rel (%p165) target = $region16
        $region15: #{_lambda_.1} parent=11 // pred_region
          _
        $region16: #{_lambda_.1} parent=11 // pred_fallthru
          _
        // Predicated region
        $region17: #{_lambda_.1} parent=11 // pred_check
          %p168 = pneg %p82
        $region18: #{_lambda_.1} parent=11 // pred_check_branch
          %170 = sbr.rel (%p168) target = $region20
        $region19: #{_lambda_.1} parent=11 // pred_region
          _
        $region20: #{_lambda_.1} parent=11 // pred_fallthru
          _
        // Predicated region
        $region21: #{_lambda_.1} parent=11 // pred_check
          %p171 = pneg %p103
        $region22: #{_lambda_.1} parent=11 // pred_check_branch
          %173 = sbr.rel (%p171) target = $region24
        $region23: #{_lambda_.1} parent=11 // pred_region
          _
        $region24: #{_lambda_.1} parent=11 // pred_fallthru
          _
        // Predicated region
        $region25: #{_lambda_.1} parent=11 // pred_check
          %p174 = pneg %p124
        $region26: #{_lambda_.1} parent=11 // pred_check_branch
          %176 = sbr.rel (%p174) target = $region28
        $region27: #{_lambda_.1} parent=11 // pred_region
          _
        $region28: #{_lambda_.1} parent=11 // pred_fallthru
          _
      $region12: #{_lambda_.1} parent=5 // pred_fallthru
        _
      %p177 = scmp.lt.s32.totalorder %s14, 2
      // Predicated region
      $region29: #{_lambda_.1} parent=5 // pred_check
        %p178 = pneg %p177
      $region30: #{_lambda_.1} parent=5 // pred_check_branch
        %180 = sbr.rel (%p178) target = $region32
      $region31: #{_lambda_.1} parent=5 // pred_region
        // Predicated region
        $region33: #{_lambda_.1} parent=31 // pred_check
          %p181 = pneg %p34
        $region34: #{_lambda_.1} parent=31 // pred_check_branch
          %183 = sbr.rel (%p181) target = $region36
        $region35: #{_lambda_.1} parent=31 // pred_region
          %s184 = smul.u32 2, %s14
          %p185 = scmp.lt.s32.totalorder %s184, 3
          %s186 = scalar_select %p185, %s184, 3
          %s187 = smul.addr %s186, 8
          %s188 = scalar_lea.vmem %s0, %s187
          %s189 = smul.u32 2, %s14
        $region36: #{_lambda_.1} parent=31 // pred_fallthru
          _
      $region32: #{_lambda_.1} parent=5 // pred_fallthru
        _
      %p190 = scmp.le.s32.totalorder 1, %s14
      %p191 = scmp.lt.s32.totalorder %s14, 3
      %p192 = pnand %p190, %p191
      %p193 = pneg %p192
      // Predicated region
      $region37: #{_lambda_.1} parent=5 // pred_check
        _
      $region38: #{_lambda_.1} parent=5 // pred_check_branch
        %195 = sbr.rel (%p192) target = $region40
      $region39: #{_lambda_.1} parent=5 // pred_region
        %s196 = ssub.s32 %s14, 1
        %s197 = smul.u32 2, %s19
        %p198 = scmp.lt.s32.totalorder %s197, 3
        %s199 = scalar_select %p198, %s197, 3
        %s200 = smul.addr %s199, 8
        %s201 = scalar_lea.vmem %s0, %s200
        %p202 = pneg %p40
        %p203 = pneg %p37
        %p204 = pneg %p61
        %p205 = pneg %p58
        %p206 = pneg %p82
        %p207 = pneg %p79
        %p208 = pneg %p103
        %p209 = pneg %p100
        %p210 = pneg %p124
        %p211 = pneg %p121
        %p212 = pneg %p150
        %p213 = pneg %p147
        %s214 = sand.u32 %s137, 1
        %s215 = scalar_lea.sflag [#allocation3], %s214
        %s216 = sand.u32 %s137, 1
        %s217 = smul.addr %s216, 8
        %s218 = scalar_lea.vmem [#allocation2], %s217
        %s219 = smul.u32 2, %s19
        %p220 = scmp.lt.s32.totalorder %s219, 3
        %s221 = scalar_select %p220, %s219, 3
        %s222 = smul.addr %s221, 8
        %s223 = scalar_lea.vmem %s0, %s222
        %s224 = smul.u32 2, %s19
        %s225 = smul.u32 2, %s19
        %v227 = vld [vmem:[%s223] sm:$0xff]
        %v228 = vld [vmem:[%s223 + $0x8] sm:$0xff]
        %v229 = vpack.c.bf16 %v228, %v227
        %v230 = vld [vmem:[%s1] sm:$0xf]
        %v231 = vld [vmem:[%s1 + $0x4] sm:$0xf]
        %v232 = vld [vmem:[%s1 + $0x8] sm:$0xf]
        %v233 = vld [vmem:[%s1 + $0xc] sm:$0xf]
        %v234 = vld [vmem:[%s1 + $0x10] sm:$0xf]
        %v235 = vld [vmem:[%s1 + $0x14] sm:$0xf]
        %v236 = vld [vmem:[%s1 + $0x18] sm:$0xf]
        %v237 = vld [vmem:[%s1 + $0x1c] sm:$0xf]
        %v238 = vld [vmem:[%s2] sm:$0x1]
        %v240 = vlaneseq
        %v241 = vshrl.u32 %v240, 7
        %v242 = vsub.s32 0, %v241
        %v243 = vrot.slane %v238, %v242
        %v253 = vunpack.c.l.b16 %v230
        %v254 = vunpack.c.l.b16 %v231
        %v255 = vunpack.c.l.b16 %v232
        %v256 = vunpack.c.l.b16 %v233
        %v257 = vunpack.c.l.b16 %v234
        %v258 = vunpack.c.l.b16 %v235
        %v259 = vunpack.c.l.b16 %v236
        %v260 = vunpack.c.l.b16 %v237
        %v261 = vpack.c.b16 %v254, %v253
        %v262 = vpack.c.b16 %v256, %v255
        %v263 = vpack.c.b16 %v258, %v257
        %v264 = vpack.c.b16 %v260, %v259
        %vm269 = vcmask 523264
        %v271 = vsel %vm269, %v229, 0
        %273 = vmatprep.subr.bf16.mxu0 0
        %274 = vmatpush1.bf16.msra.mxu0 %v261
        %275 = vmatprep.subr.bf16.mxu0 0
        %276 = vmatpush1.bf16.msra.mxu0 %v262
        %277 = vmatprep.subr.bf16.mxu0 0
        %278 = vmatpush1.bf16.msra.mxu0 %v263
        %279 = vmatprep.subr.bf16.mxu0 0
        %280 = vmatpush1.bf16.msra.mxu0 %v264
        %281 = vmatprep.subr.bf16.mxu0 0
        %282 = vmatpush1.bf16.msra.mxu0 0
        %283 = vmatprep.subr.bf16.mxu0 0
        %284 = vmatpush1.bf16.msra.mxu0 0
        %285 = vmatprep.subr.bf16.mxu0 0
        %286 = vmatpush1.bf16.msra.mxu0 0
        %287 = vmatprep.subr.bf16.mxu0 0
        %288 = vmatpush1.bf16.msra.mxu0 0
        %289 = vmatprep.subr.bf16.mxu0 0
        %290 = vmatpush1.bf16.msra.mxu0 0
        %291 = vmatprep.subr.bf16.mxu0 0
        %292 = vmatpush1.bf16.msra.mxu0 0
        %293 = vmatprep.subr.bf16.mxu0 0
        %294 = vmatpush1.bf16.msra.mxu0 0
        %295 = vmatprep.subr.bf16.mxu0 0
        %296 = vmatpush1.bf16.msra.mxu0 0
        %297 = vmatprep.subr.bf16.mxu0 0
        %298 = vmatpush1.bf16.msra.mxu0 0
        %299 = vmatprep.subr.bf16.mxu0 0
        %300 = vmatpush1.bf16.msra.mxu0 0
        %301 = vmatprep.subr.bf16.mxu0 0
        %302 = vmatpush1.bf16.msra.mxu0 0
        %303 = vmatprep.subr.bf16.mxu0 0
        %304 = vmatpush1.bf16.msra.mxu0 0
        %305 = vmatprep.mubr.bf16.mxu0 0
        %306 = vmatmul.mubr.bf16.gmra.mrb[0].mxu0 %v271
        %v307 = vpop.f32.mrb[0].mxu0
        %v308 = vadd.f32 %v243, %v307
        %v309 = vpop.f32.mrb[0].mxu0
        %v310 = vpop.f32.mrb[0].mxu0
        %v311 = vadd.f32 %v243, %v310
        %v312 = vpop.f32.mrb[0].mxu0
        %313 = vdwg.mxu0
        %v314 = vmax.f32 %v308, 0.0
        %v315 = vmax.f32 %v311, 0.0
        %v316 = vpack.c.bf16 %v315, %v314
        %v317 = vld [vmem:[%s3] sm:$0xf]
        %v318 = vld [vmem:[%s3 + $0x4] sm:$0xf]
        %v319 = vld [vmem:[%s3 + $0x8] sm:$0xf]
        %v320 = vld [vmem:[%s3 + $0xc] sm:$0xf]
        %v321 = vld [vmem:[%s3 + $0x10] sm:$0xf]
        %v322 = vld [vmem:[%s3 + $0x14] sm:$0xf]
        %v323 = vld [vmem:[%s3 + $0x18] sm:$0xf]
        %v324 = vld [vmem:[%s3 + $0x1c] sm:$0xf]
        %v325 = vld [vmem:[%s3 + $0x20] sm:$0xf]
        %v326 = vld [vmem:[%s3 + $0x24] sm:$0xf]
        %v327 = vld [vmem:[%s3 + $0x28] sm:$0xf]
        %v328 = vld [vmem:[%s3 + $0x2c] sm:$0xf]
        %v329 = vld [vmem:[%s3 + $0x30] sm:$0xf]
        %v330 = vld [vmem:[%s3 + $0x34] sm:$0xf]
        %v331 = vld [vmem:[%s3 + $0x38] sm:$0xf]
        %v332 = vld [vmem:[%s3 + $0x3c] sm:$0xf]
        %v333 = vld [vmem:[%s4] sm:$0x1]
        %v335 = vlaneseq
        %v336 = vshrl.u32 %v335, 7
        %v337 = vsub.s32 0, %v336
        %v338 = vrot.slane %v333, %v337
        %v356 = vunpack.c.l.b16 %v317
        %v357 = vunpack.c.l.b16 %v318
        %v358 = vunpack.c.l.b16 %v319
        %v359 = vunpack.c.l.b16 %v320
        %v360 = vunpack.c.l.b16 %v321
        %v361 = vunpack.c.l.b16 %v322
        %v362 = vunpack.c.l.b16 %v323
        %v363 = vunpack.c.l.b16 %v324
        %v364 = vunpack.c.l.b16 %v325
        %v365 = vunpack.c.l.b16 %v326
        %v366 = vunpack.c.l.b16 %v327
        %v367 = vunpack.c.l.b16 %v328
        %v368 = vunpack.c.l.b16 %v329
        %v369 = vunpack.c.l.b16 %v330
        %v370 = vunpack.c.l.b16 %v331
        %v371 = vunpack.c.l.b16 %v332
        %v372 = vpack.c.b16 %v357, %v356
        %v373 = vpack.c.b16 %v359, %v358
        %v374 = vpack.c.b16 %v361, %v360
        %v375 = vpack.c.b16 %v363, %v362
        %v376 = vpack.c.b16 %v365, %v364
        %v377 = vpack.c.b16 %v367, %v366
        %v378 = vpack.c.b16 %v369, %v368
        %v379 = vpack.c.b16 %v371, %v370
        %388 = vmatprep.subr.bf16.mxu0 0
        %389 = vmatpush1.bf16.msra.mxu0 %v372
        %390 = vmatprep.subr.bf16.mxu0 0
        %391 = vmatpush1.bf16.msra.mxu0 %v373
        %392 = vmatprep.subr.bf16.mxu0 0
        %393 = vmatpush1.bf16.msra.mxu0 %v374
        %394 = vmatprep.subr.bf16.mxu0 0
        %395 = vmatpush1.bf16.msra.mxu0 %v375
        %396 = vmatprep.subr.bf16.mxu0 0
        %397 = vmatpush1.bf16.msra.mxu0 %v376
        %398 = vmatprep.subr.bf16.mxu0 0
        %399 = vmatpush1.bf16.msra.mxu0 %v377
        %400 = vmatprep.subr.bf16.mxu0 0
        %401 = vmatpush1.bf16.msra.mxu0 %v378
        %402 = vmatprep.subr.bf16.mxu0 0
        %403 = vmatpush1.bf16.msra.mxu0 %v379
        %404 = vmatprep.subr.bf16.mxu0 0
        %405 = vmatpush1.bf16.msra.mxu0 0
        %406 = vmatprep.subr.bf16.mxu0 0
        %407 = vmatpush1.bf16.msra.mxu0 0
        %408 = vmatprep.subr.bf16.mxu0 0
        %409 = vmatpush1.bf16.msra.mxu0 0
        %410 = vmatprep.subr.bf16.mxu0 0
        %411 = vmatpush1.bf16.msra.mxu0 0
        %412 = vmatprep.subr.bf16.mxu0 0
        %413 = vmatpush1.bf16.msra.mxu0 0
        %414 = vmatprep.subr.bf16.mxu0 0
        %415 = vmatpush1.bf16.msra.mxu0 0
        %416 = vmatprep.subr.bf16.mxu0 0
        %417 = vmatpush1.bf16.msra.mxu0 0
        %418 = vmatprep.subr.bf16.mxu0 0
        %419 = vmatpush1.bf16.msra.mxu0 0
        %420 = vmatprep.mubr.bf16.mxu0 0
        %421 = vmatmul.mubr.bf16.gmra.mrb[0].mxu0 %v316
        %v422 = vpop.f32.mrb[0].mxu0
        %v423 = vadd.f32 %v338, %v422
        %v424 = vpop.f32.mrb[0].mxu0
        %v425 = vpop.f32.mrb[0].mxu0
        %v426 = vadd.f32 %v338, %v425
        %v427 = vpop.f32.mrb[0].mxu0
        %428 = vdwg.mxu0
        %v429 = vmax.f32 %v423, 0.0
        %v430 = vmax.f32 %v426, 0.0
        %v431 = vpack.c.bf16 %v430, %v429
        %v433 = vunpack.c.l.b16 %v431
        %v434 = vunpack.c.h.b16 %v431
        %v435 = vpack.c.b16 %v433, %v433
        %v436 = vpack.c.b16 %v434, %v434
        %439 = vst [vmem:[%s218] sm:$0xf] %v435
        %440 = vst [vmem:[%s218 + $0x4] sm:$0xf] %v436
        %s441 = sand.u32 %s137, 1
        %s442 = scalar_lea.sflag [#allocation3], %s441
        %s443 = sand.u32 %s137, 1
        %s444 = smul.addr %s443, 8
        %s445 = scalar_lea.vmem [#allocation2], %s444
        // Predicated region
        $region41: #{_lambda_.1} parent=39 // pred_check
          %p446 = pneg %p147
        $region42: #{_lambda_.1} parent=39 // pred_check_branch
          %448 = sbr.rel (%p446) target = $region44
        $region43: #{_lambda_.1} parent=39 // pred_region
          %s449 = smul.u32 2, %s19
          %s451 = ssub.s32 128, 128
          %452 = vsyncadd %s442, %s451
          %s453 = smul.addr %s449, 64
          %s454 = scalar_lea.hbm %s5, %s453
          %s455 = sshll.u32 %s445, 4
          %s456 = int_to_ptr.vmem [resolvable:$true] %s455
          %461 = dma.vmem_to_hbm [thread:$0]  %s456, 128, %s454, %s442, 64, 64, 4
        $region44: #{_lambda_.1} parent=39 // pred_fallthru
          _
      $region40: #{_lambda_.1} parent=5 // pred_fallthru
        _
      %p462 = scmp.le.s32.totalorder 2, %s14
      // Predicated region
      $region45: #{_lambda_.1} parent=5 // pred_check
        %p463 = pneg %p462
      $region46: #{_lambda_.1} parent=5 // pred_check_branch
        %465 = sbr.rel (%p463) target = $region48
      $region47: #{_lambda_.1} parent=5 // pred_region
        %s466 = ssub.s32 %s14, 2
        // Predicated region
        $region49: #{_lambda_.1} parent=47 // pred_check
          %p467 = pneg %p153
        $region50: #{_lambda_.1} parent=47 // pred_check_branch
          %469 = sbr.rel (%p467) target = $region52
        $region51: #{_lambda_.1} parent=47 // pred_region
          %s470 = sand.u32 %s138, 1
          %s471 = scalar_lea.sflag [#allocation3], %s470
          %s472 = sand.u32 %s138, 1
          %s473 = smul.addr %s472, 8
          %s474 = scalar_lea.vmem [#allocation2], %s473
          %475 = dma.done %s471, 128
        $region52: #{_lambda_.1} parent=47 // pred_fallthru
          _
      $region48: #{_lambda_.1} parent=5 // pred_fallthru
        _
    $region6: #{_lambda_.1} parent=1 // loop_footer
      %s18 = sadd.s32 1, %s14
    $region7: #{_lambda_.1} parent=1 // loop_footer_branch
      %13 = sbr.rel target = $region3
    $region8: #{_lambda_.1} parent=1 // loop_exit
      _
    %476 = vsyncpa [#allocation3], 1
    %s477 = scalar_lea.sflag [#allocation3], 1
    %478 = vsyncpa %s477, 1

</llo_original>
